<compile_context>
chip_gen: v7x
topology: tpu7x:2x2x1
jax: 0.10.0
libtpu: 0.0.40
codegen_flags: <defaults>
</compile_context>

<pallas_src>
import jax
import jax.numpy as jnp
from jax.experimental import pallas as pl
from jax.experimental.pallas import tpu as pltpu


def _round_up(x, m):
    return (x + m - 1) // m * m


def _make_row_conv_bn_relu_kernel(KH, KW, Wout):
    """One grid step = one output row: full (kh,kw,Cin) reduction + BN + ReLU."""

    def kernel(*refs):
        x_refs = refs[:KH]                              # KH x (Wp, Cin) bf16 rows
        w_ref, scale_ref, shift_ref, o_ref = refs[KH:]  # w: (KH,KW,Cin,Cout_pad)

        acc = jnp.zeros(o_ref.shape, jnp.float32)       # (Wout, Cout_pad) in vregs
        for kh in range(KH):
            row = x_refs[kh][...]                       # (Wp, Cin) bf16
            for kw in range(KW):
                a = row[kw:kw + Wout, :]                # static shifted window
                acc += jnp.dot(a, w_ref[kh, kw],
                               preferred_element_type=jnp.float32)

        # BN (inference) + ReLU epilogue in f32, lane-dense bf16 store.
        y = acc * scale_ref[...] + shift_ref[...]
        o_ref[...] = jnp.maximum(y, 0.0).astype(o_ref.dtype)

    return kernel


def basic_conv2d(x_nchw, conv_w, gamma, beta, run_mean, run_var,
                 *, stride=1, padding=0, dilation=1, groups=1, eps=1e-5):
    """BasicConv2d forward. x_nchw: (N, Cin, H, W); conv_w: (Cout, Cin, KH, KW)."""
    if stride != 1 or dilation != 1 or groups != 1:
        raise NotImplementedError(
            "Pallas BasicConv2d kernel handles stride=1, dilation=1, groups=1")

    N, Cin, H, W = x_nchw.shape
    Cout, _, KH, KW = conv_w.shape

    Hp = H + 2 * padding
    Wp = W + 2 * padding
    Hout = Hp - KH + 1
    Wout = Wp - KW + 1

    LANE = 128
    Cout_pad = _round_up(Cout, LANE)

    # ---- glue: NCHW -> NHWC (bf16 before pad to halve glue traffic) ----
    x = jnp.transpose(x_nchw, (0, 2, 3, 1)).astype(jnp.bfloat16)
    x_pad = jnp.pad(x, ((0, 0), (padding, padding), (padding, padding), (0, 0)))

    # conv weight (Cout, Cin, KH, KW) -> (KH, KW, Cin, Cout_pad) bf16
    w = jnp.transpose(conv_w, (2, 3, 1, 0)).astype(jnp.bfloat16)
    w = jnp.pad(w, ((0, 0), (0, 0), (0, 0), (0, Cout_pad - Cout)))

    # BN (inference): scale/shift applied in the f32 epilogue (not baked into
    # bf16 weights, to avoid amplifying quantization error).
    scale = (gamma / jnp.sqrt(run_var + eps)).astype(jnp.float32)       # (Cout,)
    shift = (beta - run_mean * scale).astype(jnp.float32)               # (Cout,)
    scale = jnp.pad(scale, (0, Cout_pad - Cout)).reshape(1, Cout_pad)
    shift = jnp.pad(shift, (0, Cout_pad - Cout)).reshape(1, Cout_pad)

    grid = (N, Hout)

    # KH shifted-row views of the same padded input (Blocked size-1 dims ->
    # the index_map value is the element row index, i.e. the kh tap shift).
    x_specs = [
        pl.BlockSpec((None, None, Wp, Cin),
                     lambda n, oh, kh=kh: (n, oh + kh, 0, 0))
        for kh in range(KH)
    ]
    w_spec = pl.BlockSpec((KH, KW, Cin, Cout_pad), lambda n, oh: (0, 0, 0, 0))
    vec_spec = pl.BlockSpec((1, Cout_pad), lambda n, oh: (0, 0))
    out_spec = pl.BlockSpec((None, None, Wout, Cout_pad),
                            lambda n, oh: (n, oh, 0, 0))

    # Accurate advisory cost: KH-fold activation row reads, weights once.
    flops = 2 * N * Hout * Wout * KH * KW * Cin * Cout_pad
    bytes_accessed = (
        N * Hout * KH * Wp * Cin * 2          # bf16 activation rows
        + KH * KW * Cin * Cout_pad * 2        # bf16 resident weights (once)
        + 2 * Cout_pad * 4                    # f32 scale + shift
        + N * Hout * Wout * Cout_pad * 2      # bf16 output writeback
    )

    # VMEM budget (double-buffered inputs/outputs + resident weight slab);
    # 32 MiB is safe on all generations, raise only if the weights need it.
    vmem_need = (
        2 * KH * Wp * Cin * 2
        + 2 * KH * KW * Cin * Cout_pad * 2
        + 2 * 2 * Cout_pad * 4
        + 2 * Wout * Cout_pad * 2
        + Wout * Cout_pad * 4
    )
    vmem_limit = int(min(max(32 * 1024 * 1024, 2 * vmem_need),
                         64 * 1024 * 1024))

    out = pl.pallas_call(
        _make_row_conv_bn_relu_kernel(KH, KW, Wout),
        out_shape=jax.ShapeDtypeStruct((N, Hout, Wout, Cout_pad), jnp.bfloat16),
        grid_spec=pltpu.PrefetchScalarGridSpec(
            num_scalar_prefetch=0,
            grid=grid,
            in_specs=x_specs + [w_spec, vec_spec, vec_spec],
            out_specs=out_spec,
        ),
        compiler_params=pltpu.CompilerParams(
            dimension_semantics=("parallel", "parallel"),
            vmem_limit_bytes=vmem_limit,
        ),
        cost_estimate=pl.CostEstimate(
            flops=flops, transcendentals=0, bytes_accessed=bytes_accessed),
    )(*([x_pad] * KH), w, scale, shift)

    out = out[..., :Cout]                      # drop Cout lane padding
    # TODO(synk): keep NHWC end-to-end if the surrounding model allows it; the
    # NCHW transposes below only exist to match the PyTorch module contract.
    return jnp.transpose(out, (0, 3, 1, 2))


def _reference(x_nchw, conv_w, gamma, beta, run_mean, run_var,
               *, stride=1, padding=0, eps=1e-5):
    y = jax.lax.conv_general_dilated(
        x_nchw.astype(jnp.float32), conv_w.astype(jnp.float32),
        window_strides=(stride, stride),
        padding=[(padding, padding), (padding, padding)],
        dimension_numbers=("NCHW", "OIHW", "NCHW"))
    scale = gamma / jnp.sqrt(run_var + eps)
    shift = beta - run_mean * scale
    y = y * scale[None, :, None, None] + shift[None, :, None, None]
    return jnp.maximum(y, 0.0)


if __name__ == "__main__":
    key = jax.random.PRNGKey(0)
    k_x, k_w, k_g, k_b, k_m, k_v = jax.random.split(key, 6)

    # module config: BasicConv2d(in_planes=4, out_planes=8, kernel_size=3,
    #                            stride=1, padding=1)
    N, Cin, H, W = 2, 4, 16, 16
    Cout, KH, KW = 8, 3, 3
    stride, padding = 1, 1

    x = jax.random.normal(k_x, (N, Cin, H, W), dtype=jnp.float32)
    conv_w = 0.1 * jax.random.normal(k_w, (Cout, Cin, KH, KW), dtype=jnp.float32)
    gamma = 1.0 + 0.1 * jax.random.normal(k_g, (Cout,), dtype=jnp.float32)
    beta = 0.1 * jax.random.normal(k_b, (Cout,), dtype=jnp.float32)
    run_mean = 0.1 * jax.random.normal(k_m, (Cout,), dtype=jnp.float32)
    run_var = jnp.abs(jax.random.normal(k_v, (Cout,), dtype=jnp.float32)) + 0.5

    out = basic_conv2d(x, conv_w, gamma, beta, run_mean, run_var,
                       stride=stride, padding=padding)
    out = jax.block_until_ready(out)

    ref = _reference(x, conv_w, gamma, beta, run_mean, run_var,
                     stride=stride, padding=padding)
    assert out.shape == (N, Cout, H, W)
    out_f32 = out.astype(jnp.float32)
    # bf16 activations/weights/output (f32 accumulation + epilogue) tolerance
    err = float(jnp.max(jnp.abs(out_f32 - ref)))
    assert jnp.allclose(out_f32, ref, atol=5e-2, rtol=5e-2), err

    print("KERNEL_OK")
</pallas_src>

<mosaic_0001>
module attributes {stable_mosaic.version = 11 : i64} {
  func.func @kernel(%arg0: i32, %arg1: i32, %arg2: memref<1x1x18x4xbf16, #tpu.memory_space<vmem>>, %arg3: memref<1x1x18x4xbf16, #tpu.memory_space<vmem>>, %arg4: memref<1x1x18x4xbf16, #tpu.memory_space<vmem>>, %arg5: memref<3x3x4x128xbf16, #tpu.memory_space<vmem>>, %arg6: memref<1x128xf32, #tpu.memory_space<vmem>>, %arg7: memref<1x128xf32, #tpu.memory_space<vmem>>, %arg8: memref<1x1x16x128xbf16, #tpu.memory_space<vmem>>) attributes {dimension_semantics = [#tpu.dimension_semantics<parallel>, #tpu.dimension_semantics<parallel>], iteration_bounds = array<i64: 2, 16>, scalar_prefetch = 0 : i64, scratch_operands = 0 : i64, tpu.core_type = #tpu.core_type<tc>, window_params = [{transform_indices = @transform_0, window_bounds = array<i64: 1, 1, 18, 4>}, {transform_indices = @transform_1, window_bounds = array<i64: 1, 1, 18, 4>}, {transform_indices = @transform_2, window_bounds = array<i64: 1, 1, 18, 4>}, {pipeline_mode = #tpu.pipeline_mode<synchronous>, transform_indices = @transform_3, window_bounds = array<i64: 3, 3, 4, 128>}, {pipeline_mode = #tpu.pipeline_mode<synchronous>, transform_indices = @transform_4, window_bounds = array<i64: 1, 128>}, {pipeline_mode = #tpu.pipeline_mode<synchronous>, transform_indices = @transform_5, window_bounds = array<i64: 1, 128>}, {transform_indices = @transform_6, window_bounds = array<i64: 1, 1, 16, 128>}]} {
    %cst = arith.constant 0.000000e+00 : f32
    %0 = vector.broadcast %cst : f32 to vector<16x128xf32>
    %c0 = arith.constant 0 : index
    %c0_0 = arith.constant 0 : index
    %c0_1 = arith.constant 0 : index
    %c0_2 = arith.constant 0 : index
    %1 = vector.load %arg2[%c0, %c0_0, %c0_1, %c0_2] : memref<1x1x18x4xbf16, #tpu.memory_space<vmem>>, vector<1x1x18x4xbf16>
    %2 = vector.shape_cast %1 : vector<1x1x18x4xbf16> to vector<18x4xbf16>
    %3 = vector.extract_strided_slice %2 {offsets = [0, 0], sizes = [16, 4], strides = [1, 1]} : vector<18x4xbf16> to vector<16x4xbf16>
    %c0_3 = arith.constant 0 : index
    %c0_4 = arith.constant 0 : index
    %c0_5 = arith.constant 0 : index
    %c0_6 = arith.constant 0 : index
    %4 = vector.load %arg5[%c0_3, %c0_4, %c0_5, %c0_6] : memref<3x3x4x128xbf16, #tpu.memory_space<vmem>>, vector<1x1x4x128xbf16>
    %5 = vector.shape_cast %4 : vector<1x1x4x128xbf16> to vector<4x128xbf16>
    %cst_7 = arith.constant dense<0.000000e+00> : vector<16x128xf32>
    %6 = tpu.matmul %3, %5, %cst_7 {dimension_numbers = #tpu.dot_dimension_numbers<[1], [0], [0], [1], [0, 0, 1, 1], [], []>} : vector<16x4xbf16>, vector<4x128xbf16>, vector<16x128xf32> -> vector<16x128xf32>
    %7 = arith.addf %0, %6 : vector<16x128xf32>
    %8 = vector.extract_strided_slice %2 {offsets = [1, 0], sizes = [16, 4], strides = [1, 1]} : vector<18x4xbf16> to vector<16x4xbf16>
    %c0_8 = arith.constant 0 : index
    %c1 = arith.constant 1 : index
    %c0_9 = arith.constant 0 : index
    %c0_10 = arith.constant 0 : index
    %9 = vector.load %arg5[%c0_8, %c1, %c0_9, %c0_10] : memref<3x3x4x128xbf16, #tpu.memory_space<vmem>>, vector<1x1x4x128xbf16>
    %10 = vector.shape_cast %9 : vector<1x1x4x128xbf16> to vector<4x128xbf16>
    %cst_11 = arith.constant dense<0.000000e+00> : vector<16x128xf32>
    %11 = tpu.matmul %8, %10, %cst_11 {dimension_numbers = #tpu.dot_dimension_numbers<[1], [0], [0], [1], [0, 0, 1, 1], [], []>} : vector<16x4xbf16>, vector<4x128xbf16>, vector<16x128xf32> -> vector<16x128xf32>
    %12 = arith.addf %7, %11 : vector<16x128xf32>
    %13 = vector.extract_strided_slice %2 {offsets = [2, 0], sizes = [16, 4], strides = [1, 1]} : vector<18x4xbf16> to vector<16x4xbf16>
    %c0_12 = arith.constant 0 : index
    %c2 = arith.constant 2 : index
    %c0_13 = arith.constant 0 : index
    %c0_14 = arith.constant 0 : index
    %14 = vector.load %arg5[%c0_12, %c2, %c0_13, %c0_14] : memref<3x3x4x128xbf16, #tpu.memory_space<vmem>>, vector<1x1x4x128xbf16>
    %15 = vector.shape_cast %14 : vector<1x1x4x128xbf16> to vector<4x128xbf16>
    %cst_15 = arith.constant dense<0.000000e+00> : vector<16x128xf32>
    %16 = tpu.matmul %13, %15, %cst_15 {dimension_numbers = #tpu.dot_dimension_numbers<[1], [0], [0], [1], [0, 0, 1, 1], [], []>} : vector<16x4xbf16>, vector<4x128xbf16>, vector<16x128xf32> -> vector<16x128xf32>
    %17 = arith.addf %12, %16 : vector<16x128xf32>
    %c0_16 = arith.constant 0 : index
    %c0_17 = arith.constant 0 : index
    %c0_18 = arith.constant 0 : index
    %c0_19 = arith.constant 0 : index
    %18 = vector.load %arg3[%c0_16, %c0_17, %c0_18, %c0_19] : memref<1x1x18x4xbf16, #tpu.memory_space<vmem>>, vector<1x1x18x4xbf16>
    %19 = vector.shape_cast %18 : vector<1x1x18x4xbf16> to vector<18x4xbf16>
    %20 = vector.extract_strided_slice %19 {offsets = [0, 0], sizes = [16, 4], strides = [1, 1]} : vector<18x4xbf16> to vector<16x4xbf16>
    %c1_20 = arith.constant 1 : index
    %c0_21 = arith.constant 0 : index
    %c0_22 = arith.constant 0 : index
    %c0_23 = arith.constant 0 : index
    %21 = vector.load %arg5[%c1_20, %c0_21, %c0_22, %c0_23] : memref<3x3x4x128xbf16, #tpu.memory_space<vmem>>, vector<1x1x4x128xbf16>
    %22 = vector.shape_cast %21 : vector<1x1x4x128xbf16> to vector<4x128xbf16>
    %cst_24 = arith.constant dense<0.000000e+00> : vector<16x128xf32>
    %23 = tpu.matmul %20, %22, %cst_24 {dimension_numbers = #tpu.dot_dimension_numbers<[1], [0], [0], [1], [0, 0, 1, 1], [], []>} : vector<16x4xbf16>, vector<4x128xbf16>, vector<16x128xf32> -> vector<16x128xf32>
    %24 = arith.addf %17, %23 : vector<16x128xf32>
    %25 = vector.extract_strided_slice %19 {offsets = [1, 0], sizes = [16, 4], strides = [1, 1]} : vector<18x4xbf16> to vector<16x4xbf16>
    %c1_25 = arith.constant 1 : index
    %c1_26 = arith.constant 1 : index
    %c0_27 = arith.constant 0 : index
    %c0_28 = arith.constant 0 : index
    %26 = vector.load %arg5[%c1_25, %c1_26, %c0_27, %c0_28] : memref<3x3x4x128xbf16, #tpu.memory_space<vmem>>, vector<1x1x4x128xbf16>
    %27 = vector.shape_cast %26 : vector<1x1x4x128xbf16> to vector<4x128xbf16>
    %cst_29 = arith.constant dense<0.000000e+00> : vector<16x128xf32>
    %28 = tpu.matmul %25, %27, %cst_29 {dimension_numbers = #tpu.dot_dimension_numbers<[1], [0], [0], [1], [0, 0, 1, 1], [], []>} : vector<16x4xbf16>, vector<4x128xbf16>, vector<16x128xf32> -> vector<16x128xf32>
    %29 = arith.addf %24, %28 : vector<16x128xf32>
    %30 = vector.extract_strided_slice %19 {offsets = [2, 0], sizes = [16, 4], strides = [1, 1]} : vector<18x4xbf16> to vector<16x4xbf16>
    %c1_30 = arith.constant 1 : index
    %c2_31 = arith.constant 2 : index
    %c0_32 = arith.constant 0 : index
    %c0_33 = arith.constant 0 : index
    %31 = vector.load %arg5[%c1_30, %c2_31, %c0_32, %c0_33] : memref<3x3x4x128xbf16, #tpu.memory_space<vmem>>, vector<1x1x4x128xbf16>
    %32 = vector.shape_cast %31 : vector<1x1x4x128xbf16> to vector<4x128xbf16>
    %cst_34 = arith.constant dense<0.000000e+00> : vector<16x128xf32>
    %33 = tpu.matmul %30, %32, %cst_34 {dimension_numbers = #tpu.dot_dimension_numbers<[1], [0], [0], [1], [0, 0, 1, 1], [], []>} : vector<16x4xbf16>, vector<4x128xbf16>, vector<16x128xf32> -> vector<16x128xf32>
    %34 = arith.addf %29, %33 : vector<16x128xf32>
    %c0_35 = arith.constant 0 : index
    %c0_36 = arith.constant 0 : index
    %c0_37 = arith.constant 0 : index
    %c0_38 = arith.constant 0 : index
    %35 = vector.load %arg4[%c0_35, %c0_36, %c0_37, %c0_38] : memref<1x1x18x4xbf16, #tpu.memory_space<vmem>>, vector<1x1x18x4xbf16>
    %36 = vector.shape_cast %35 : vector<1x1x18x4xbf16> to vector<18x4xbf16>
    %37 = vector.extract_strided_slice %36 {offsets = [0, 0], sizes = [16, 4], strides = [1, 1]} : vector<18x4xbf16> to vector<16x4xbf16>
    %c2_39 = arith.constant 2 : index
    %c0_40 = arith.constant 0 : index
    %c0_41 = arith.constant 0 : index
    %c0_42 = arith.constant 0 : index
    %38 = vector.load %arg5[%c2_39, %c0_40, %c0_41, %c0_42] : memref<3x3x4x128xbf16, #tpu.memory_space<vmem>>, vector<1x1x4x128xbf16>
    %39 = vector.shape_cast %38 : vector<1x1x4x128xbf16> to vector<4x128xbf16>
    %cst_43 = arith.constant dense<0.000000e+00> : vector<16x128xf32>
    %40 = tpu.matmul %37, %39, %cst_43 {dimension_numbers = #tpu.dot_dimension_numbers<[1], [0], [0], [1], [0, 0, 1, 1], [], []>} : vector<16x4xbf16>, vector<4x128xbf16>, vector<16x128xf32> -> vector<16x128xf32>
    %41 = arith.addf %34, %40 : vector<16x128xf32>
    %42 = vector.extract_strided_slice %36 {offsets = [1, 0], sizes = [16, 4], strides = [1, 1]} : vector<18x4xbf16> to vector<16x4xbf16>
    %c2_44 = arith.constant 2 : index
    %c1_45 = arith.constant 1 : index
    %c0_46 = arith.constant 0 : index
    %c0_47 = arith.constant 0 : index
    %43 = vector.load %arg5[%c2_44, %c1_45, %c0_46, %c0_47] : memref<3x3x4x128xbf16, #tpu.memory_space<vmem>>, vector<1x1x4x128xbf16>
    %44 = vector.shape_cast %43 : vector<1x1x4x128xbf16> to vector<4x128xbf16>
    %cst_48 = arith.constant dense<0.000000e+00> : vector<16x128xf32>
    %45 = tpu.matmul %42, %44, %cst_48 {dimension_numbers = #tpu.dot_dimension_numbers<[1], [0], [0], [1], [0, 0, 1, 1], [], []>} : vector<16x4xbf16>, vector<4x128xbf16>, vector<16x128xf32> -> vector<16x128xf32>
    %46 = arith.addf %41, %45 : vector<16x128xf32>
    %47 = vector.extract_strided_slice %36 {offsets = [2, 0], sizes = [16, 4], strides = [1, 1]} : vector<18x4xbf16> to vector<16x4xbf16>
    %c2_49 = arith.constant 2 : index
    %c2_50 = arith.constant 2 : index
    %c0_51 = arith.constant 0 : index
    %c0_52 = arith.constant 0 : index
    %48 = vector.load %arg5[%c2_49, %c2_50, %c0_51, %c0_52] : memref<3x3x4x128xbf16, #tpu.memory_space<vmem>>, vector<1x1x4x128xbf16>
    %49 = vector.shape_cast %48 : vector<1x1x4x128xbf16> to vector<4x128xbf16>
    %cst_53 = arith.constant dense<0.000000e+00> : vector<16x128xf32>
    %50 = tpu.matmul %47, %49, %cst_53 {dimension_numbers = #tpu.dot_dimension_numbers<[1], [0], [0], [1], [0, 0, 1, 1], [], []>} : vector<16x4xbf16>, vector<4x128xbf16>, vector<16x128xf32> -> vector<16x128xf32>
    %51 = arith.addf %46, %50 : vector<16x128xf32>
    %c0_54 = arith.constant 0 : index
    %c0_55 = arith.constant 0 : index
    %52 = vector.load %arg6[%c0_54, %c0_55] : memref<1x128xf32, #tpu.memory_space<vmem>>, vector<1x128xf32>
    %53 = vector.broadcast %52 : vector<1x128xf32> to vector<16x128xf32>
    %54 = arith.mulf %51, %53 : vector<16x128xf32>
    %c0_56 = arith.constant 0 : index
    %c0_57 = arith.constant 0 : index
    %55 = vector.load %arg7[%c0_56, %c0_57] : memref<1x128xf32, #tpu.memory_space<vmem>>, vector<1x128xf32>
    %56 = vector.broadcast %55 : vector<1x128xf32> to vector<16x128xf32>
    %57 = arith.addf %54, %56 : vector<16x128xf32>
    %cst_58 = arith.constant 0.000000e+00 : f32
    %58 = vector.broadcast %cst_58 : f32 to vector<16x128xf32>
    %59 = arith.maximumf %57, %58 : vector<16x128xf32>
    %60 = arith.truncf %59 : vector<16x128xf32> to vector<16x128xbf16>
    %c0_59 = arith.constant 0 : index
    %c0_60 = arith.constant 0 : index
    %c0_61 = arith.constant 0 : index
    %c0_62 = arith.constant 0 : index
    %61 = vector.load %arg8[%c0_59, %c0_60, %c0_61, %c0_62] : memref<1x1x16x128xbf16, #tpu.memory_space<vmem>>, vector<1x1x16x128xbf16>
    %62 = vector.shape_cast %61 : vector<1x1x16x128xbf16> to vector<16x128xbf16>
    %63 = vector.shape_cast %60 : vector<16x128xbf16> to vector<1x1x16x128xbf16>
    tpu.vector_store %arg8[%c0_59, %c0_60, %c0_61, %c0_62], %63 {strides = array<i32>} : memref<1x1x16x128xbf16, #tpu.memory_space<vmem>>, vector<1x1x16x128xbf16>,
    return
  }
  func.func @transform_0(%arg0: i32, %arg1: i32) -> (i32, i32, i32, i32) {
    %c0_i32 = arith.constant 0 : i32
    %0 = arith.addi %arg1, %c0_i32 : i32
    %c0_i32_0 = arith.constant 0 : i32
    %c0_i32_1 = arith.constant 0 : i32
    %c0_i32_2 = arith.constant 0 : i32
    return %arg0, %0, %c0_i32_0, %c0_i32_1 : i32, i32, i32, i32
  }
  func.func @transform_1(%arg0: i32, %arg1: i32) -> (i32, i32, i32, i32) {
    %c1_i32 = arith.constant 1 : i32
    %0 = arith.addi %arg1, %c1_i32 : i32
    %c0_i32 = arith.constant 0 : i32
    %c0_i32_0 = arith.constant 0 : i32
    %c0_i32_1 = arith.constant 0 : i32
    return %arg0, %0, %c0_i32, %c0_i32_0 : i32, i32, i32, i32
  }
  func.func @transform_2(%arg0: i32, %arg1: i32) -> (i32, i32, i32, i32) {
    %c2_i32 = arith.constant 2 : i32
    %0 = arith.addi %arg1, %c2_i32 : i32
    %c0_i32 = arith.constant 0 : i32
    %c0_i32_0 = arith.constant 0 : i32
    %c0_i32_1 = arith.constant 0 : i32
    return %arg0, %0, %c0_i32, %c0_i32_0 : i32, i32, i32, i32
  }
  func.func @transform_3(%arg0: i32, %arg1: i32) -> (i32, i32, i32, i32) {
    %c0_i32 = arith.constant 0 : i32
    %c0_i32_0 = arith.constant 0 : i32
    %c0_i32_1 = arith.constant 0 : i32
    %c0_i32_2 = arith.constant 0 : i32
    %c0_i32_3 = arith.constant 0 : i32
    return %c0_i32, %c0_i32_0, %c0_i32_1, %c0_i32_2 : i32, i32, i32, i32
  }
  func.func @transform_4(%arg0: i32, %arg1: i32) -> (i32, i32) {
    %c0_i32 = arith.constant 0 : i32
    %c0_i32_0 = arith.constant 0 : i32
    %c0_i32_1 = arith.constant 0 : i32
    return %c0_i32, %c0_i32_0 : i32, i32
  }
  func.func @transform_5(%arg0: i32, %arg1: i32) -> (i32, i32) {
    %c0_i32 = arith.constant 0 : i32
    %c0_i32_0 = arith.constant 0 : i32
    %c0_i32_1 = arith.constant 0 : i32
    return %c0_i32, %c0_i32_0 : i32, i32
  }
  func.func @transform_6(%arg0: i32, %arg1: i32) -> (i32, i32, i32, i32) {
    %c0_i32 = arith.constant 0 : i32
    %c0_i32_0 = arith.constant 0 : i32
    %c0_i32_1 = arith.constant 0 : i32
    return %arg0, %arg1, %c0_i32, %c0_i32_0 : i32, i32, i32, i32
  }
}

</mosaic_0001>

<llo_original>
// kernel: tpu_custom_call.1
$region0: #{tpu_custom_call.1}
  #allocation0 [shape = 'u32[]', space=smem, size = 0x4, offset = 0x4, fixed_abs, tag = 'smem constant byte address 0x4 - core index']
  #allocation1 [shape = 'u32[144,128]{1,0:T(1,128)}', space=vmem, size = 0x12000, scoped, tag = 'internal scratch']
  %s0 = inlined_call_operand.vmem [shape: bf16[2,18,18,4], index: 0, kind: input, shape index: {}]
  %s1 = inlined_call_operand.vmem [shape: bf16[2,18,18,4], index: 1, kind: input, shape index: {}]
  %s2 = inlined_call_operand.vmem [shape: bf16[2,18,18,4], index: 2, kind: input, shape index: {}]
  %s3 = inlined_call_operand.vmem [shape: bf16[3,3,4,128], index: 3, kind: input, shape index: {}]
  %s4 = inlined_call_operand.vmem [shape: f32[1,128], index: 4, kind: input, shape index: {}]
  %s5 = inlined_call_operand.vmem [shape: f32[1,128], index: 5, kind: input, shape index: {}]
  %s6 = inlined_call_operand.hbm [shape: bf16[2,16,16,128], index: 6, kind: output, shape index: {}]
  %s7 = sld [smem:[#allocation0]]
  $region57: #{tpu_custom_call.1} parent=0
    _
  %s9 = ssub.s32 1, %s7
  %s10 = scalar_select 0, %s9, %s7
  $region1: #{tpu_custom_call.1} parent=0
    #allocation2 [shape = 'u8[8192]{0}', space=vmem, size = 0x2000, scoped, tag = 'output window, operand 0']
    #allocation3 [shape = 's32[2]{0}', space=sflag, size = 0x8, scoped, tag = 'scoped memory for tpu_custom_call.1']
    %11 = vsyncpa [#allocation3], 0
    %s12 = scalar_lea.sflag [#allocation3], 1
    %13 = vsyncpa %s12, 0
    loop: start=0, step=1, limit=34
    $region2: #{tpu_custom_call.1} parent=1 // loop_pre_header
      _
    $region3: #{tpu_custom_call.1} parent=1 // loop_header
      %s15 = sphi 0, %s19
      %p16 = scmp.ge.s32.totalorder %s15, 34
      %s22 = sphi 0, %s34
      %s23 = sphi 0, %s30
      %s24 = sphi 0, %s22
      %s25 = sphi 0, %s23
      %s26 = sphi 0, %s24
      %s27 = sphi 0, %s25
      %s39 = sphi 0, %s41
      %s42 = sphi 0, %s39
      %s43 = sphi 0, %s42
      %s59 = sphi 0, %s43
      %s69 = sphi 0, %s71
      %s72 = sphi 0, %s69
      %s73 = sphi 0, %s72
      %s89 = sphi 0, %s73
      %s99 = sphi 0, %s101
      %s102 = sphi 0, %s99
      %s103 = sphi 0, %s102
      %s119 = sphi 0, %s103
      %s123 = sphi 0, %s123
      %s125 = sphi 0, %s123
      %s126 = sphi 0, %s125
      %s140 = sphi 0, %s126
      %s144 = sphi 0, %s144
      %s146 = sphi 0, %s144
      %s147 = sphi 0, %s146
      %s161 = sphi 0, %s147
      %s165 = sphi 0, %s165
      %s167 = sphi 0, %s165
      %s168 = sphi 0, %s167
      %s182 = sphi 0, %s168
      %s190 = sphi 0, %s192
      %s193 = sphi 0, %s190
      %s194 = sphi 0, %s193
      %s210 = sphi 0, %s194
    $region4: #{tpu_custom_call.1} parent=1 // loop_header_branch
      %18 = sbr.rel (%p16) target = $region8
    $region5: #{tpu_custom_call.1} parent=1 // loop_body
      %s20 = ssub.s32 %s15, 1
      %s21 = ssub.s32 %s15, 2
      %s28 = sadd.s32 1, %s23
      %p29 = scmp.ge.s32.totalorder %s28, 16
      %s30 = scalar_select %p29, 0, %s28
      %s31 = sadd.s32 1, %s22
      %s32 = scalar_select %p29, %s31, %s22
      %p33 = scmp.ge.s32.totalorder %s32, 2
      %s34 = scalar_select %p33, 0, %s32
      %s35 = ssub.s32 %s22, %s34
      %s36 = ssub.s32 %s23, %s30
      %s37 = sor.u32 %s35, %s36
      %p38 = scmp.eq.s32.totalorder %s37, 0
      %s40 = sadd.s32 %s39, 1
      %s41 = scalar_select %p38, %s39, %s40
      %p44 = pneg %p38
      %p45 = scmp.eq.s32.totalorder %s15, 31
      %p46 = por %p44, %p45
      %p47 = scmp.ne.s32.totalorder %s39, %s42
      %p48 = scmp.eq.s32.totalorder %s15, 0
      %p49 = por %p47, %p48
      %p50 = scmp.ne.s32.totalorder %s39, %s42
      %p51 = scmp.eq.s32.totalorder %s20, 31
      %p52 = por %p50, %p51
      %p53 = scmp.ne.s32.totalorder %s42, %s43
      %p54 = scmp.eq.s32.totalorder %s20, 0
      %p55 = por %p53, %p54
      %p56 = scmp.ne.s32.totalorder %s42, %s43
      %p57 = scmp.eq.s32.totalorder %s21, 31
      %p58 = por %p56, %p57
      %p60 = scmp.ne.s32.totalorder %s43, %s59
      %p61 = scmp.eq.s32.totalorder %s21, 0
      %p62 = por %p60, %p61
      %s63 = sadd.s32 %s23, 1
      %s64 = sadd.s32 %s30, 1
      %s65 = ssub.s32 %s22, %s34
      %s66 = ssub.s32 %s63, %s64
      %s67 = sor.u32 %s65, %s66
      %p68 = scmp.eq.s32.totalorder %s67, 0
      %s70 = sadd.s32 %s69, 1
      %s71 = scalar_select %p68, %s69, %s70
      %p74 = pneg %p68
      %p75 = scmp.eq.s32.totalorder %s15, 31
      %p76 = por %p74, %p75
      %p77 = scmp.ne.s32.totalorder %s69, %s72
      %p78 = scmp.eq.s32.totalorder %s15, 0
      %p79 = por %p77, %p78
      %p80 = scmp.ne.s32.totalorder %s69, %s72
      %p81 = scmp.eq.s32.totalorder %s20, 31
      %p82 = por %p80, %p81
      %p83 = scmp.ne.s32.totalorder %s72, %s73
      %p84 = scmp.eq.s32.totalorder %s20, 0
      %p85 = por %p83, %p84
      %p86 = scmp.ne.s32.totalorder %s72, %s73
      %p87 = scmp.eq.s32.totalorder %s21, 31
      %p88 = por %p86, %p87
      %p90 = scmp.ne.s32.totalorder %s73, %s89
      %p91 = scmp.eq.s32.totalorder %s21, 0
      %p92 = por %p90, %p91
      %s93 = sadd.s32 %s23, 2
      %s94 = sadd.s32 %s30, 2
      %s95 = ssub.s32 %s22, %s34
      %s96 = ssub.s32 %s93, %s94
      %s97 = sor.u32 %s95, %s96
      %p98 = scmp.eq.s32.totalorder %s97, 0
      %s100 = sadd.s32 %s99, 1
      %s101 = scalar_select %p98, %s99, %s100
      %p104 = pneg %p98
      %p105 = scmp.eq.s32.totalorder %s15, 31
      %p106 = por %p104, %p105
      %p107 = scmp.ne.s32.totalorder %s99, %s102
      %p108 = scmp.eq.s32.totalorder %s15, 0
      %p109 = por %p107, %p108
      %p110 = scmp.ne.s32.totalorder %s99, %s102
      %p111 = scmp.eq.s32.totalorder %s20, 31
      %p112 = por %p110, %p111
      %p113 = scmp.ne.s32.totalorder %s102, %s103
      %p114 = scmp.eq.s32.totalorder %s20, 0
      %p115 = por %p113, %p114
      %p116 = scmp.ne.s32.totalorder %s102, %s103
      %p117 = scmp.eq.s32.totalorder %s21, 31
      %p118 = por %p116, %p117
      %p120 = scmp.ne.s32.totalorder %s103, %s119
      %p121 = scmp.eq.s32.totalorder %s21, 0
      %p122 = por %p120, %p121
      %s124 = sadd.s32 %s123, 1
      %p127 = scmp.eq.s32.totalorder %s15, 31
      %p128 = scmp.ne.s32.totalorder %s123, %s125
      %p129 = scmp.eq.s32.totalorder %s15, 0
      %p130 = por %p128, %p129
      %p131 = scmp.ne.s32.totalorder %s123, %s125
      %p132 = scmp.eq.s32.totalorder %s20, 31
      %p133 = por %p131, %p132
      %p134 = scmp.ne.s32.totalorder %s125, %s126
      %p135 = scmp.eq.s32.totalorder %s20, 0
      %p136 = por %p134, %p135
      %p137 = scmp.ne.s32.totalorder %s125, %s126
      %p138 = scmp.eq.s32.totalorder %s21, 31
      %p139 = por %p137, %p138
      %p141 = scmp.ne.s32.totalorder %s126, %s140
      %p142 = scmp.eq.s32.totalorder %s21, 0
      %p143 = por %p141, %p142
      %s145 = sadd.s32 %s144, 1
      %p148 = scmp.eq.s32.totalorder %s15, 31
      %p149 = scmp.ne.s32.totalorder %s144, %s146
      %p150 = scmp.eq.s32.totalorder %s15, 0
      %p151 = por %p149, %p150
      %p152 = scmp.ne.s32.totalorder %s144, %s146
      %p153 = scmp.eq.s32.totalorder %s20, 31
      %p154 = por %p152, %p153
      %p155 = scmp.ne.s32.totalorder %s146, %s147
      %p156 = scmp.eq.s32.totalorder %s20, 0
      %p157 = por %p155, %p156
      %p158 = scmp.ne.s32.totalorder %s146, %s147
      %p159 = scmp.eq.s32.totalorder %s21, 31
      %p160 = por %p158, %p159
      %p162 = scmp.ne.s32.totalorder %s147, %s161
      %p163 = scmp.eq.s32.totalorder %s21, 0
      %p164 = por %p162, %p163
      %s166 = sadd.s32 %s165, 1
      %p169 = scmp.eq.s32.totalorder %s15, 31
      %p170 = scmp.ne.s32.totalorder %s165, %s167
      %p171 = scmp.eq.s32.totalorder %s15, 0
      %p172 = por %p170, %p171
      %p173 = scmp.ne.s32.totalorder %s165, %s167
      %p174 = scmp.eq.s32.totalorder %s20, 31
      %p175 = por %p173, %p174
      %p176 = scmp.ne.s32.totalorder %s167, %s168
      %p177 = scmp.eq.s32.totalorder %s20, 0
      %p178 = por %p176, %p177
      %p179 = scmp.ne.s32.totalorder %s167, %s168
      %p180 = scmp.eq.s32.totalorder %s21, 31
      %p181 = por %p179, %p180
      %p183 = scmp.ne.s32.totalorder %s168, %s182
      %p184 = scmp.eq.s32.totalorder %s21, 0
      %p185 = por %p183, %p184
      %s186 = ssub.s32 %s22, %s34
      %s187 = ssub.s32 %s23, %s30
      %s188 = sor.u32 %s186, %s187
      %p189 = scmp.eq.s32.totalorder %s188, 0
      %s191 = sadd.s32 %s190, 1
      %s192 = scalar_select %p189, %s190, %s191
      %p195 = pneg %p189
      %p196 = scmp.eq.s32.totalorder %s15, 31
      %p197 = por %p195, %p196
      %p198 = scmp.ne.s32.totalorder %s190, %s193
      %p199 = scmp.eq.s32.totalorder %s15, 0
      %p200 = por %p198, %p199
      %p201 = scmp.ne.s32.totalorder %s190, %s193
      %p202 = scmp.eq.s32.totalorder %s20, 31
      %p203 = por %p201, %p202
      %p204 = scmp.ne.s32.totalorder %s193, %s194
      %p205 = scmp.eq.s32.totalorder %s20, 0
      %p206 = por %p204, %p205
      %p207 = scmp.ne.s32.totalorder %s193, %s194
      %p208 = scmp.eq.s32.totalorder %s21, 31
      %p209 = por %p207, %p208
      %p211 = scmp.ne.s32.totalorder %s194, %s210
      %p212 = scmp.eq.s32.totalorder %s21, 0
      %p213 = por %p211, %p212
      %p214 = scmp.le.s32.totalorder 1, %s15
      %p215 = scmp.lt.s32.totalorder %s15, 33
      %p216 = pnand %p214, %p215
      %p217 = pneg %p216
      // Predicated region
      $region9: #{tpu_custom_call.1} parent=5 // pred_check
        _
      $region10: #{tpu_custom_call.1} parent=5 // pred_check_branch
        %219 = sbr.rel (%p216) target = $region12
      $region11: #{tpu_custom_call.1} parent=5 // pred_region
        %s220 = ssub.s32 %s15, 1
        // Predicated region
        $region13: #{tpu_custom_call.1} parent=11 // pred_check
          %p221 = pneg %p136
        $region14: #{tpu_custom_call.1} parent=11 // pred_check_branch
          %223 = sbr.rel (%p221) target = $region16
        $region15: #{tpu_custom_call.1} parent=11 // pred_region
          _
        $region16: #{tpu_custom_call.1} parent=11 // pred_fallthru
          _
        // Predicated region
        $region17: #{tpu_custom_call.1} parent=11 // pred_check
          %p224 = pneg %p157
        $region18: #{tpu_custom_call.1} parent=11 // pred_check_branch
          %226 = sbr.rel (%p224) target = $region20
        $region19: #{tpu_custom_call.1} parent=11 // pred_region
          _
        $region20: #{tpu_custom_call.1} parent=11 // pred_fallthru
          _
        // Predicated region
        $region21: #{tpu_custom_call.1} parent=11 // pred_check
          %p227 = pneg %p178
        $region22: #{tpu_custom_call.1} parent=11 // pred_check_branch
          %229 = sbr.rel (%p227) target = $region24
        $region23: #{tpu_custom_call.1} parent=11 // pred_region
          _
        $region24: #{tpu_custom_call.1} parent=11 // pred_fallthru
          _
      $region12: #{tpu_custom_call.1} parent=5 // pred_fallthru
        _
      %p230 = scmp.lt.s32.totalorder %s15, 32
      // Predicated region
      $region25: #{tpu_custom_call.1} parent=5 // pred_check
        %p231 = pneg %p230
      $region26: #{tpu_custom_call.1} parent=5 // pred_check_branch
        %233 = sbr.rel (%p231) target = $region28
      $region27: #{tpu_custom_call.1} parent=5 // pred_region
        // Predicated region
        $region29: #{tpu_custom_call.1} parent=27 // pred_check
          %p234 = pneg %p49
        $region30: #{tpu_custom_call.1} parent=27 // pred_check_branch
          %236 = sbr.rel (%p234) target = $region32
        $region31: #{tpu_custom_call.1} parent=27 // pred_region
          %p237 = scmp.lt.s32.totalorder %s22, 1
          %s238 = scalar_select %p237, %s22, 1
          %p239 = scmp.lt.s32.totalorder %s23, 17
          %s240 = scalar_select %p239, %s23, 17
          %s241 = smul.addr %s240, 3
          %s242 = smul.addr %s238, 54
          %s243 = sadd.s32 %s241, %s242
          %s244 = smul.addr %s243, 4
          %s245 = scalar_lea.vmem %s0, %s244
        $region32: #{tpu_custom_call.1} parent=27 // pred_fallthru
          _
        // Predicated region
        $region33: #{tpu_custom_call.1} parent=27 // pred_check
          %p246 = pneg %p79
        $region34: #{tpu_custom_call.1} parent=27 // pred_check_branch
          %248 = sbr.rel (%p246) target = $region36
        $region35: #{tpu_custom_call.1} parent=27 // pred_region
          %s249 = sadd.s32 %s23, 1
          %p250 = scmp.lt.s32.totalorder %s22, 1
          %s251 = scalar_select %p250, %s22, 1
          %p252 = scmp.lt.s32.totalorder %s249, 17
          %s253 = scalar_select %p252, %s249, 17
          %s254 = smul.addr %s253, 3
          %s255 = smul.addr %s251, 54
          %s256 = sadd.s32 %s254, %s255
          %s257 = smul.addr %s256, 4
          %s258 = scalar_lea.vmem %s1, %s257
          %s259 = sadd.s32 %s23, 1
        $region36: #{tpu_custom_call.1} parent=27 // pred_fallthru
          _
        // Predicated region
        $region37: #{tpu_custom_call.1} parent=27 // pred_check
          %p260 = pneg %p109
        $region38: #{tpu_custom_call.1} parent=27 // pred_check_branch
          %262 = sbr.rel (%p260) target = $region40
        $region39: #{tpu_custom_call.1} parent=27 // pred_region
          %s263 = sadd.s32 %s23, 2
          %p264 = scmp.lt.s32.totalorder %s22, 1
          %s265 = scalar_select %p264, %s22, 1
          %p266 = scmp.lt.s32.totalorder %s263, 17
          %s267 = scalar_select %p266, %s263, 17
          %s268 = smul.addr %s267, 3
          %s269 = smul.addr %s265, 54
          %s270 = sadd.s32 %s268, %s269
          %s271 = smul.addr %s270, 4
          %s272 = scalar_lea.vmem %s2, %s271
          %s273 = sadd.s32 %s23, 2
        $region40: #{tpu_custom_call.1} parent=27 // pred_fallthru
          _
      $region28: #{tpu_custom_call.1} parent=5 // pred_fallthru
        _
      %p274 = scmp.le.s32.totalorder 1, %s15
      %p275 = scmp.lt.s32.totalorder %s15, 33
      %p276 = pnand %p274, %p275
      %p277 = pneg %p276
      // Predicated region
      $region41: #{tpu_custom_call.1} parent=5 // pred_check
        _
      $region42: #{tpu_custom_call.1} parent=5 // pred_check_branch
        %279 = sbr.rel (%p276) target = $region44
      $region43: #{tpu_custom_call.1} parent=5 // pred_region
        %s280 = ssub.s32 %s15, 1
        %p281 = scmp.lt.s32.totalorder %s24, 1
        %s282 = scalar_select %p281, %s24, 1
        %p283 = scmp.lt.s32.totalorder %s25, 17
        %s284 = scalar_select %p283, %s25, 17
        %s285 = smul.addr %s284, 3
        %s286 = smul.addr %s282, 54
        %s287 = sadd.s32 %s285, %s286
        %s288 = smul.addr %s287, 4
        %s289 = scalar_lea.vmem %s0, %s288
        %p290 = pneg %p55
        %p291 = pneg %p52
        %s292 = sadd.s32 %s25, 1
        %p293 = scmp.lt.s32.totalorder %s24, 1
        %s294 = scalar_select %p293, %s24, 1
        %p295 = scmp.lt.s32.totalorder %s292, 17
        %s296 = scalar_select %p295, %s292, 17
        %s297 = smul.addr %s296, 3
        %s298 = smul.addr %s294, 54
        %s299 = sadd.s32 %s297, %s298
        %s300 = smul.addr %s299, 4
        %s301 = scalar_lea.vmem %s1, %s300
        %p302 = pneg %p85
        %p303 = pneg %p82
        %s304 = sadd.s32 %s25, 2
        %p305 = scmp.lt.s32.totalorder %s24, 1
        %s306 = scalar_select %p305, %s24, 1
        %p307 = scmp.lt.s32.totalorder %s304, 17
        %s308 = scalar_select %p307, %s304, 17
        %s309 = smul.addr %s308, 3
        %s310 = smul.addr %s306, 54
        %s311 = sadd.s32 %s309, %s310
        %s312 = smul.addr %s311, 4
        %s313 = scalar_lea.vmem %s2, %s312
        %p314 = pneg %p115
        %p315 = pneg %p112
        %p316 = pneg %p136
        %p317 = pneg %p133
        %p318 = pneg %p157
        %p319 = pneg %p154
        %p320 = pneg %p178
        %p321 = pneg %p175
        %p322 = pneg %p206
        %p323 = pneg %p203
        %s324 = sand.u32 %s193, 1
        %s325 = scalar_lea.sflag [#allocation3], %s324
        %s326 = sand.u32 %s193, 1
        %s327 = smul.addr %s326, 8
        %s328 = scalar_lea.vmem [#allocation2], %s327
        %p329 = scmp.lt.s32.totalorder %s24, 1
        %s330 = scalar_select %p329, %s24, 1
        %p331 = scmp.lt.s32.totalorder %s25, 17
        %s332 = scalar_select %p331, %s25, 17
        %s333 = smul.addr %s332, 3
        %s334 = smul.addr %s330, 54
        %s335 = sadd.s32 %s333, %s334
        %s336 = smul.addr %s335, 4
        %s337 = scalar_lea.vmem %s0, %s336
        %s338 = sadd.s32 %s25, 1
        %p339 = scmp.lt.s32.totalorder %s24, 1
        %s340 = scalar_select %p339, %s24, 1
        %p341 = scmp.lt.s32.totalorder %s338, 17
        %s342 = scalar_select %p341, %s338, 17
        %s343 = smul.addr %s342, 3
        %s344 = smul.addr %s340, 54
        %s345 = sadd.s32 %s343, %s344
        %s346 = smul.addr %s345, 4
        %s347 = scalar_lea.vmem %s1, %s346
        %s348 = sadd.s32 %s25, 1
        %s349 = sadd.s32 %s25, 2
        %p350 = scmp.lt.s32.totalorder %s24, 1
        %s351 = scalar_select %p350, %s24, 1
        %p352 = scmp.lt.s32.totalorder %s349, 17
        %s353 = scalar_select %p352, %s349, 17
        %s354 = smul.addr %s353, 3
        %s355 = smul.addr %s351, 54
        %s356 = sadd.s32 %s354, %s355
        %s357 = smul.addr %s356, 4
        %s358 = scalar_lea.vmem %s2, %s357
        %s359 = sadd.s32 %s25, 2
        %v361 = vld [vmem:[%s337] sm:$0xf]
        %v362 = vld [vmem:[%s337 + $0x4] sm:$0xf]
        %v363 = vld [vmem:[%s337 + $0x8] sm:$0x1]
        %v364 = vld [vmem:[%s3] sm:$0x3]
        %s365 = scalar_lea.vmem %s3, 2
        %v366 = vld [vmem:[%s365] sm:$0x3]
        %v370 = vunpack.c.l.b16 %v361
        %v371 = vunpack.c.l.b16 %v362
        %v372 = vunpack.c.l.b16 %v363
        %v373 = vpack.c.b16 %v371, %v370
        %v374 = vpack.c.b16 %v372, %v372
        %vm375 = vsmask.f32 7424
        %v377 = vshrl.u32 %v373, 16
        %v379 = vshll.u32 %v373, 16
        %v381 = vrot.slane %v379, 1
        %v382 = vor.u32 %v377, %v381
        %v384 = vshll.u32 %v374, 16
        %v386 = vrot.slane %v384, 1
        %v387 = vsel %vm375, %v382, %v386
        %vm388 = vcmask 31744
        %v390 = vsel %vm388, %v387, 0
        %vm392 = vcmask 1041408
        %v394 = vsel %vm392, %v366, 0
        %396 = vmatprep.subr.bf16.mxu0 0
        %397 = vmatpush1.bf16.msra.mxu0 %v394
        %398 = vmatprep.subr.bf16.mxu0 0
        %399 = vmatpush1.bf16.msra.mxu0 0
        %400 = vmatprep.subr.bf16.mxu0 0
        %401 = vmatpush1.bf16.msra.mxu0 0
        %402 = vmatprep.subr.bf16.mxu0 0
        %403 = vmatpush1.bf16.msra.mxu0 0
        %404 = vmatprep.subr.bf16.mxu0 0
        %405 = vmatpush1.bf16.msra.mxu0 0
        %406 = vmatprep.subr.bf16.mxu0 0
        %407 = vmatpush1.bf16.msra.mxu0 0
        %408 = vmatprep.subr.bf16.mxu0 0
        %409 = vmatpush1.bf16.msra.mxu0 0
        %410 = vmatprep.subr.bf16.mxu0 0
        %411 = vmatpush1.bf16.msra.mxu0 0
        %412 = vmatprep.subr.bf16.mxu0 0
        %413 = vmatpush1.bf16.msra.mxu0 0
        %414 = vmatprep.subr.bf16.mxu0 0
        %415 = vmatpush1.bf16.msra.mxu0 0
        %416 = vmatprep.subr.bf16.mxu0 0
        %417 = vmatpush1.bf16.msra.mxu0 0
        %418 = vmatprep.subr.bf16.mxu0 0
        %419 = vmatpush1.bf16.msra.mxu0 0
        %420 = vmatprep.subr.bf16.mxu0 0
        %421 = vmatpush1.bf16.msra.mxu0 0
        %422 = vmatprep.subr.bf16.mxu0 0
        %423 = vmatpush1.bf16.msra.mxu0 0
        %424 = vmatprep.subr.bf16.mxu0 0
        %425 = vmatpush1.bf16.msra.mxu0 0
        %426 = vmatprep.subr.bf16.mxu0 0
        %427 = vmatpush1.bf16.msra.mxu0 0
        %428 = vmatprep.mubr.bf16.mxu0 0
        %429 = vmatmul.mubr.bf16.gmra.mrb[0].mxu0 %v390
        %v430 = vpop.f32.mrb[0].mxu0
        %v431 = vadd.f32 0.0, %v430
        %v432 = vpop.f32.mrb[0].mxu0
        %v433 = vpop.f32.mrb[0].mxu0
        %v434 = vadd.f32 0.0, %v433
        %v435 = vpop.f32.mrb[0].mxu0
        %436 = vdwg.mxu0
        %v437 = vsel %vm388, %v373, 0
        %v440 = vsel %vm392, %v364, 0
        %442 = vmatprep.subr.bf16.mxu0 0
        %443 = vmatpush1.bf16.msra.mxu0 %v440
        %444 = vmatprep.subr.bf16.mxu0 0
        %445 = vmatpush1.bf16.msra.mxu0 0
        %446 = vmatprep.subr.bf16.mxu0 0
        %447 = vmatpush1.bf16.msra.mxu0 0
        %448 = vmatprep.subr.bf16.mxu0 0
        %449 = vmatpush1.bf16.msra.mxu0 0
        %450 = vmatprep.subr.bf16.mxu0 0
        %451 = vmatpush1.bf16.msra.mxu0 0
        %452 = vmatprep.subr.bf16.mxu0 0
        %453 = vmatpush1.bf16.msra.mxu0 0
        %454 = vmatprep.subr.bf16.mxu0 0
        %455 = vmatpush1.bf16.msra.mxu0 0
        %456 = vmatprep.subr.bf16.mxu0 0
        %457 = vmatpush1.bf16.msra.mxu0 0
        %458 = vmatprep.subr.bf16.mxu0 0
        %459 = vmatpush1.bf16.msra.mxu0 0
        %460 = vmatprep.subr.bf16.mxu0 0
        %461 = vmatpush1.bf16.msra.mxu0 0
        %462 = vmatprep.subr.bf16.mxu0 0
        %463 = vmatpush1.bf16.msra.mxu0 0
        %464 = vmatprep.subr.bf16.mxu0 0
        %465 = vmatpush1.bf16.msra.mxu0 0
        %466 = vmatprep.subr.bf16.mxu0 0
        %467 = vmatpush1.bf16.msra.mxu0 0
        %468 = vmatprep.subr.bf16.mxu0 0
        %469 = vmatpush1.bf16.msra.mxu0 0
        %470 = vmatprep.subr.bf16.mxu0 0
        %471 = vmatpush1.bf16.msra.mxu0 0
        %472 = vmatprep.subr.bf16.mxu0 0
        %473 = vmatpush1.bf16.msra.mxu0 0
        %474 = vmatprep.mubr.bf16.mxu0 0
        %475 = vmatmul.mubr.bf16.gmra.mrb[0].mxu0 %v437
        %v476 = vpop.f32.mrb[0].mxu0
        %v477 = vadd.f32 %v431, %v476
        %v478 = vpop.f32.mrb[0].mxu0
        %v479 = vpop.f32.mrb[0].mxu0
        %v480 = vadd.f32 %v434, %v479
        %v481 = vpop.f32.mrb[0].mxu0
        %482 = vdwg.mxu0
        %s483 = scalar_lea.vmem %s3, 4
        %v484 = vld [vmem:[%s483] sm:$0x3]
        %vm485 = vcmask 1046528
        %v486 = vrot.slane %v373, 1
        %v487 = vrot.slane %v374, 1
        %v488 = vsel %vm485, %v486, %v487
        %v490 = vsel %vm388, %v488, 0
        %v493 = vsel %vm392, %v484, 0
        %495 = vmatprep.subr.bf16.mxu0 0
        %496 = vmatpush1.bf16.msra.mxu0 %v493
        %497 = vmatprep.subr.bf16.mxu0 0
        %498 = vmatpush1.bf16.msra.mxu0 0
        %499 = vmatprep.subr.bf16.mxu0 0
        %500 = vmatpush1.bf16.msra.mxu0 0
        %501 = vmatprep.subr.bf16.mxu0 0
        %502 = vmatpush1.bf16.msra.mxu0 0
        %503 = vmatprep.subr.bf16.mxu0 0
        %504 = vmatpush1.bf16.msra.mxu0 0
        %505 = vmatprep.subr.bf16.mxu0 0
        %506 = vmatpush1.bf16.msra.mxu0 0
        %507 = vmatprep.subr.bf16.mxu0 0
        %508 = vmatpush1.bf16.msra.mxu0 0
        %509 = vmatprep.subr.bf16.mxu0 0
        %510 = vmatpush1.bf16.msra.mxu0 0
        %511 = vmatprep.subr.bf16.mxu0 0
        %512 = vmatpush1.bf16.msra.mxu0 0
        %513 = vmatprep.subr.bf16.mxu0 0
        %514 = vmatpush1.bf16.msra.mxu0 0
        %515 = vmatprep.subr.bf16.mxu0 0
        %516 = vmatpush1.bf16.msra.mxu0 0
        %517 = vmatprep.subr.bf16.mxu0 0
        %518 = vmatpush1.bf16.msra.mxu0 0
        %519 = vmatprep.subr.bf16.mxu0 0
        %520 = vmatpush1.bf16.msra.mxu0 0
        %521 = vmatprep.subr.bf16.mxu0 0
        %522 = vmatpush1.bf16.msra.mxu0 0
        %523 = vmatprep.subr.bf16.mxu0 0
        %524 = vmatpush1.bf16.msra.mxu0 0
        %525 = vmatprep.subr.bf16.mxu0 0
        %526 = vmatpush1.bf16.msra.mxu0 0
        %527 = vmatprep.mubr.bf16.mxu0 0
        %528 = vmatmul.mubr.bf16.gmra.mrb[0].mxu0 %v490
        %v529 = vpop.f32.mrb[0].mxu0
        %v530 = vadd.f32 0.0, %v529
        %v531 = vpop.f32.mrb[0].mxu0
        %v532 = vpop.f32.mrb[0].mxu0
        %v533 = vadd.f32 0.0, %v532
        %v534 = vpop.f32.mrb[0].mxu0
        %535 = vdwg.mxu0
        %v536 = vadd.f32 %v477, %v530
        %v537 = vadd.f32 %v480, %v533
        %v538 = vld [vmem:[%s347] sm:$0xf]
        %v539 = vld [vmem:[%s347 + $0x4] sm:$0xf]
        %v540 = vld [vmem:[%s347 + $0x8] sm:$0x1]
        %s541 = scalar_lea.vmem %s3, 6
        %v542 = vld [vmem:[%s541] sm:$0x3]
        %v545 = vunpack.c.l.b16 %v538
        %v546 = vunpack.c.l.b16 %v539
        %v547 = vpack.c.b16 %v546, %v545
        %v549 = vsel %vm388, %v547, 0
        %v552 = vsel %vm392, %v542, 0
        %554 = vmatprep.subr.bf16.mxu0 0
        %555 = vmatpush1.bf16.msra.mxu0 %v552
        %556 = vmatprep.subr.bf16.mxu0 0
        %557 = vmatpush1.bf16.msra.mxu0 0
        %558 = vmatprep.subr.bf16.mxu0 0
        %559 = vmatpush1.bf16.msra.mxu0 0
        %560 = vmatprep.subr.bf16.mxu0 0
        %561 = vmatpush1.bf16.msra.mxu0 0
        %562 = vmatprep.subr.bf16.mxu0 0
        %563 = vmatpush1.bf16.msra.mxu0 0
        %564 = vmatprep.subr.bf16.mxu0 0
        %565 = vmatpush1.bf16.msra.mxu0 0
        %566 = vmatprep.subr.bf16.mxu0 0
        %567 = vmatpush1.bf16.msra.mxu0 0
        %568 = vmatprep.subr.bf16.mxu0 0
        %569 = vmatpush1.bf16.msra.mxu0 0
        %570 = vmatprep.subr.bf16.mxu0 0
        %571 = vmatpush1.bf16.msra.mxu0 0
        %572 = vmatprep.subr.bf16.mxu0 0
        %573 = vmatpush1.bf16.msra.mxu0 0
        %574 = vmatprep.subr.bf16.mxu0 0
        %575 = vmatpush1.bf16.msra.mxu0 0
        %576 = vmatprep.subr.bf16.mxu0 0
        %577 = vmatpush1.bf16.msra.mxu0 0
        %578 = vmatprep.subr.bf16.mxu0 0
        %579 = vmatpush1.bf16.msra.mxu0 0
        %580 = vmatprep.subr.bf16.mxu0 0
        %581 = vmatpush1.bf16.msra.mxu0 0
        %582 = vmatprep.subr.bf16.mxu0 0
        %583 = vmatpush1.bf16.msra.mxu0 0
        %584 = vmatprep.subr.bf16.mxu0 0
        %585 = vmatpush1.bf16.msra.mxu0 0
        %586 = vmatprep.mubr.bf16.mxu0 0
        %587 = vmatmul.mubr.bf16.gmra.mrb[0].mxu0 %v549
        %v588 = vpop.f32.mrb[0].mxu0
        %v589 = vadd.f32 0.0, %v588
        %v590 = vpop.f32.mrb[0].mxu0
        %v591 = vpop.f32.mrb[0].mxu0
        %v592 = vadd.f32 0.0, %v591
        %v593 = vpop.f32.mrb[0].mxu0
        %594 = vdwg.mxu0
        %v595 = vadd.f32 %v536, %v589
        %v596 = vadd.f32 %v537, %v592
        %s597 = scalar_lea.vmem %s3, 8
        %v598 = vld [vmem:[%s597] sm:$0x3]
        %v600 = vunpack.c.l.b16 %v540
        %v601 = vpack.c.b16 %v600, %v600
        %v602 = vshrl.u32 %v547, 16
        %v604 = vshll.u32 %v547, 16
        %v606 = vrot.slane %v604, 1
        %v607 = vor.u32 %v602, %v606
        %v609 = vshll.u32 %v601, 16
        %v611 = vrot.slane %v609, 1
        %v612 = vsel %vm375, %v607, %v611
        %v614 = vsel %vm388, %v612, 0
        %v617 = vsel %vm392, %v598, 0
        %619 = vmatprep.subr.bf16.mxu0 0
        %620 = vmatpush1.bf16.msra.mxu0 %v617
        %621 = vmatprep.subr.bf16.mxu0 0
        %622 = vmatpush1.bf16.msra.mxu0 0
        %623 = vmatprep.subr.bf16.mxu0 0
        %624 = vmatpush1.bf16.msra.mxu0 0
        %625 = vmatprep.subr.bf16.mxu0 0
        %626 = vmatpush1.bf16.msra.mxu0 0
        %627 = vmatprep.subr.bf16.mxu0 0
        %628 = vmatpush1.bf16.msra.mxu0 0
        %629 = vmatprep.subr.bf16.mxu0 0
        %630 = vmatpush1.bf16.msra.mxu0 0
        %631 = vmatprep.subr.bf16.mxu0 0
        %632 = vmatpush1.bf16.msra.mxu0 0
        %633 = vmatprep.subr.bf16.mxu0 0
        %634 = vmatpush1.bf16.msra.mxu0 0
        %635 = vmatprep.subr.bf16.mxu0 0
        %636 = vmatpush1.bf16.msra.mxu0 0
        %637 = vmatprep.subr.bf16.mxu0 0
        %638 = vmatpush1.bf16.msra.mxu0 0
        %639 = vmatprep.subr.bf16.mxu0 0
        %640 = vmatpush1.bf16.msra.mxu0 0
        %641 = vmatprep.subr.bf16.mxu0 0
        %642 = vmatpush1.bf16.msra.mxu0 0
        %643 = vmatprep.subr.bf16.mxu0 0
        %644 = vmatpush1.bf16.msra.mxu0 0
        %645 = vmatprep.subr.bf16.mxu0 0
        %646 = vmatpush1.bf16.msra.mxu0 0
        %647 = vmatprep.subr.bf16.mxu0 0
        %648 = vmatpush1.bf16.msra.mxu0 0
        %649 = vmatprep.subr.bf16.mxu0 0
        %650 = vmatpush1.bf16.msra.mxu0 0
        %651 = vmatprep.mubr.bf16.mxu0 0
        %652 = vmatmul.mubr.bf16.gmra.mrb[0].mxu0 %v614
        %v653 = vpop.f32.mrb[0].mxu0
        %v654 = vadd.f32 0.0, %v653
        %v655 = vpop.f32.mrb[0].mxu0
        %v656 = vpop.f32.mrb[0].mxu0
        %v657 = vadd.f32 0.0, %v656
        %v658 = vpop.f32.mrb[0].mxu0
        %659 = vdwg.mxu0
        %v660 = vadd.f32 %v595, %v654
        %v661 = vadd.f32 %v596, %v657
        %s662 = scalar_lea.vmem %s3, 10
        %v663 = vld [vmem:[%s662] sm:$0x3]
        %v664 = vrot.slane %v547, 1
        %v665 = vrot.slane %v601, 1
        %v666 = vsel %vm485, %v664, %v665
        %v668 = vsel %vm388, %v666, 0
        %v671 = vsel %vm392, %v663, 0
        %673 = vmatprep.subr.bf16.mxu0 0
        %674 = vmatpush1.bf16.msra.mxu0 %v671
        %675 = vmatprep.subr.bf16.mxu0 0
        %676 = vmatpush1.bf16.msra.mxu0 0
        %677 = vmatprep.subr.bf16.mxu0 0
        %678 = vmatpush1.bf16.msra.mxu0 0
        %679 = vmatprep.subr.bf16.mxu0 0
        %680 = vmatpush1.bf16.msra.mxu0 0
        %681 = vmatprep.subr.bf16.mxu0 0
        %682 = vmatpush1.bf16.msra.mxu0 0
        %683 = vmatprep.subr.bf16.mxu0 0
        %684 = vmatpush1.bf16.msra.mxu0 0
        %685 = vmatprep.subr.bf16.mxu0 0
        %686 = vmatpush1.bf16.msra.mxu0 0
        %687 = vmatprep.subr.bf16.mxu0 0
        %688 = vmatpush1.bf16.msra.mxu0 0
        %689 = vmatprep.subr.bf16.mxu0 0
        %690 = vmatpush1.bf16.msra.mxu0 0
        %691 = vmatprep.subr.bf16.mxu0 0
        %692 = vmatpush1.bf16.msra.mxu0 0
        %693 = vmatprep.subr.bf16.mxu0 0
        %694 = vmatpush1.bf16.msra.mxu0 0
        %695 = vmatprep.subr.bf16.mxu0 0
        %696 = vmatpush1.bf16.msra.mxu0 0
        %697 = vmatprep.subr.bf16.mxu0 0
        %698 = vmatpush1.bf16.msra.mxu0 0
        %699 = vmatprep.subr.bf16.mxu0 0
        %700 = vmatpush1.bf16.msra.mxu0 0
        %701 = vmatprep.subr.bf16.mxu0 0
        %702 = vmatpush1.bf16.msra.mxu0 0
        %703 = vmatprep.subr.bf16.mxu0 0
        %704 = vmatpush1.bf16.msra.mxu0 0
        %705 = vmatprep.mubr.bf16.mxu0 0
        %706 = vmatmul.mubr.bf16.gmra.mrb[0].mxu0 %v668
        %v707 = vpop.f32.mrb[0].mxu0
        %v708 = vadd.f32 0.0, %v707
        %v709 = vpop.f32.mrb[0].mxu0
        %v710 = vpop.f32.mrb[0].mxu0
        %v711 = vadd.f32 0.0, %v710
        %v712 = vpop.f32.mrb[0].mxu0
        %713 = vdwg.mxu0
        %v714 = vadd.f32 %v660, %v708
        %v715 = vadd.f32 %v661, %v711
        %v716 = vld [vmem:[%s358] sm:$0xf]
        %v717 = vld [vmem:[%s358 + $0x4] sm:$0xf]
        %v718 = vld [vmem:[%s358 + $0x8] sm:$0x1]
        %s719 = scalar_lea.vmem %s3, 12
        %v720 = vld [vmem:[%s719] sm:$0x3]
        %v723 = vunpack.c.l.b16 %v716
        %v724 = vunpack.c.l.b16 %v717
        %v725 = vpack.c.b16 %v724, %v723
        %v727 = vsel %vm388, %v725, 0
        %v730 = vsel %vm392, %v720, 0
        %732 = vmatprep.subr.bf16.mxu0 0
        %733 = vmatpush1.bf16.msra.mxu0 %v730
        %734 = vmatprep.subr.bf16.mxu0 0
        %735 = vmatpush1.bf16.msra.mxu0 0
        %736 = vmatprep.subr.bf16.mxu0 0
        %737 = vmatpush1.bf16.msra.mxu0 0
        %738 = vmatprep.subr.bf16.mxu0 0
        %739 = vmatpush1.bf16.msra.mxu0 0
        %740 = vmatprep.subr.bf16.mxu0 0
        %741 = vmatpush1.bf16.msra.mxu0 0
        %742 = vmatprep.subr.bf16.mxu0 0
        %743 = vmatpush1.bf16.msra.mxu0 0
        %744 = vmatprep.subr.bf16.mxu0 0
        %745 = vmatpush1.bf16.msra.mxu0 0
        %746 = vmatprep.subr.bf16.mxu0 0
        %747 = vmatpush1.bf16.msra.mxu0 0
        %748 = vmatprep.subr.bf16.mxu0 0
        %749 = vmatpush1.bf16.msra.mxu0 0
        %750 = vmatprep.subr.bf16.mxu0 0
        %751 = vmatpush1.bf16.msra.mxu0 0
        %752 = vmatprep.subr.bf16.mxu0 0
        %753 = vmatpush1.bf16.msra.mxu0 0
        %754 = vmatprep.subr.bf16.mxu0 0
        %755 = vmatpush1.bf16.msra.mxu0 0
        %756 = vmatprep.subr.bf16.mxu0 0
        %757 = vmatpush1.bf16.msra.mxu0 0
        %758 = vmatprep.subr.bf16.mxu0 0
        %759 = vmatpush1.bf16.msra.mxu0 0
        %760 = vmatprep.subr.bf16.mxu0 0
        %761 = vmatpush1.bf16.msra.mxu0 0
        %762 = vmatprep.subr.bf16.mxu0 0
        %763 = vmatpush1.bf16.msra.mxu0 0
        %764 = vmatprep.mubr.bf16.mxu0 0
        %765 = vmatmul.mubr.bf16.gmra.mrb[0].mxu0 %v727
        %v766 = vpop.f32.mrb[0].mxu0
        %v767 = vadd.f32 0.0, %v766
        %v768 = vpop.f32.mrb[0].mxu0
        %v769 = vpop.f32.mrb[0].mxu0
        %v770 = vadd.f32 0.0, %v769
        %v771 = vpop.f32.mrb[0].mxu0
        %772 = vdwg.mxu0
        %v773 = vadd.f32 %v714, %v767
        %v774 = vadd.f32 %v715, %v770
        %s775 = scalar_lea.vmem %s3, 14
        %v776 = vld [vmem:[%s775] sm:$0x3]
        %v778 = vunpack.c.l.b16 %v718
        %v779 = vpack.c.b16 %v778, %v778
        %v780 = vshrl.u32 %v725, 16
        %v782 = vshll.u32 %v725, 16
        %v784 = vrot.slane %v782, 1
        %v785 = vor.u32 %v780, %v784
        %v787 = vshll.u32 %v779, 16
        %v789 = vrot.slane %v787, 1
        %v790 = vsel %vm375, %v785, %v789
        %v792 = vsel %vm388, %v790, 0
        %v795 = vsel %vm392, %v776, 0
        %797 = vmatprep.subr.bf16.mxu0 0
        %798 = vmatpush1.bf16.msra.mxu0 %v795
        %799 = vmatprep.subr.bf16.mxu0 0
        %800 = vmatpush1.bf16.msra.mxu0 0
        %801 = vmatprep.subr.bf16.mxu0 0
        %802 = vmatpush1.bf16.msra.mxu0 0
        %803 = vmatprep.subr.bf16.mxu0 0
        %804 = vmatpush1.bf16.msra.mxu0 0
        %805 = vmatprep.subr.bf16.mxu0 0
        %806 = vmatpush1.bf16.msra.mxu0 0
        %807 = vmatprep.subr.bf16.mxu0 0
        %808 = vmatpush1.bf16.msra.mxu0 0
        %809 = vmatprep.subr.bf16.mxu0 0
        %810 = vmatpush1.bf16.msra.mxu0 0
        %811 = vmatprep.subr.bf16.mxu0 0
        %812 = vmatpush1.bf16.msra.mxu0 0
        %813 = vmatprep.subr.bf16.mxu0 0
        %814 = vmatpush1.bf16.msra.mxu0 0
        %815 = vmatprep.subr.bf16.mxu0 0
        %816 = vmatpush1.bf16.msra.mxu0 0
        %817 = vmatprep.subr.bf16.mxu0 0
        %818 = vmatpush1.bf16.msra.mxu0 0
        %819 = vmatprep.subr.bf16.mxu0 0
        %820 = vmatpush1.bf16.msra.mxu0 0
        %821 = vmatprep.subr.bf16.mxu0 0
        %822 = vmatpush1.bf16.msra.mxu0 0
        %823 = vmatprep.subr.bf16.mxu0 0
        %824 = vmatpush1.bf16.msra.mxu0 0
        %825 = vmatprep.subr.bf16.mxu0 0
        %826 = vmatpush1.bf16.msra.mxu0 0
        %827 = vmatprep.subr.bf16.mxu0 0
        %828 = vmatpush1.bf16.msra.mxu0 0
        %829 = vmatprep.mubr.bf16.mxu0 0
        %830 = vmatmul.mubr.bf16.gmra.mrb[0].mxu0 %v792
        %v831 = vpop.f32.mrb[0].mxu0
        %v832 = vadd.f32 0.0, %v831
        %v833 = vpop.f32.mrb[0].mxu0
        %v834 = vpop.f32.mrb[0].mxu0
        %v835 = vadd.f32 0.0, %v834
        %v836 = vpop.f32.mrb[0].mxu0
        %837 = vdwg.mxu0
        %v838 = vadd.f32 %v773, %v832
        %v839 = vadd.f32 %v774, %v835
        %s840 = scalar_lea.vmem %s3, 16
        %v841 = vld [vmem:[%s840] sm:$0x3]
        %v842 = vrot.slane %v725, 1
        %v843 = vrot.slane %v779, 1
        %v844 = vsel %vm485, %v842, %v843
        %v846 = vsel %vm388, %v844, 0
        %v849 = vsel %vm392, %v841, 0
        %851 = vmatprep.subr.bf16.mxu0 0
        %852 = vmatpush1.bf16.msra.mxu0 %v849
        %853 = vmatprep.subr.bf16.mxu0 0
        %854 = vmatpush1.bf16.msra.mxu0 0
        %855 = vmatprep.subr.bf16.mxu0 0
        %856 = vmatpush1.bf16.msra.mxu0 0
        %857 = vmatprep.subr.bf16.mxu0 0
        %858 = vmatpush1.bf16.msra.mxu0 0
        %859 = vmatprep.subr.bf16.mxu0 0
        %860 = vmatpush1.bf16.msra.mxu0 0
        %861 = vmatprep.subr.bf16.mxu0 0
        %862 = vmatpush1.bf16.msra.mxu0 0
        %863 = vmatprep.subr.bf16.mxu0 0
        %864 = vmatpush1.bf16.msra.mxu0 0
        %865 = vmatprep.subr.bf16.mxu0 0
        %866 = vmatpush1.bf16.msra.mxu0 0
        %867 = vmatprep.subr.bf16.mxu0 0
        %868 = vmatpush1.bf16.msra.mxu0 0
        %869 = vmatprep.subr.bf16.mxu0 0
        %870 = vmatpush1.bf16.msra.mxu0 0
        %871 = vmatprep.subr.bf16.mxu0 0
        %872 = vmatpush1.bf16.msra.mxu0 0
        %873 = vmatprep.subr.bf16.mxu0 0
        %874 = vmatpush1.bf16.msra.mxu0 0
        %875 = vmatprep.subr.bf16.mxu0 0
        %876 = vmatpush1.bf16.msra.mxu0 0
        %877 = vmatprep.subr.bf16.mxu0 0
        %878 = vmatpush1.bf16.msra.mxu0 0
        %879 = vmatprep.subr.bf16.mxu0 0
        %880 = vmatpush1.bf16.msra.mxu0 0
        %881 = vmatprep.subr.bf16.mxu0 0
        %882 = vmatpush1.bf16.msra.mxu0 0
        %883 = vmatprep.mubr.bf16.mxu0 0
        %884 = vmatmul.mubr.bf16.gmra.mrb[0].mxu0 %v846
        %v885 = vpop.f32.mrb[0].mxu0
        %v886 = vadd.f32 0.0, %v885
        %v887 = vpop.f32.mrb[0].mxu0
        %v888 = vpop.f32.mrb[0].mxu0
        %v889 = vadd.f32 0.0, %v888
        %v890 = vpop.f32.mrb[0].mxu0
        %891 = vdwg.mxu0
        %v892 = vadd.f32 %v838, %v886
        %v893 = vadd.f32 %v839, %v889
        %v894 = vld [vmem:[%s4] sm:$0x1]
        %v896 = vlaneseq
        %v897 = vshrl.u32 %v896, 7
        %v898 = vsub.s32 0, %v897
        %v899 = vrot.slane %v894, %v898
        %v901 = vmul.f32 %v892, %v899
        %v902 = vmul.f32 %v893, %v899
        %v903 = vld [vmem:[%s5] sm:$0x1]
        %v905 = vlaneseq
        %v906 = vshrl.u32 %v905, 7
        %v907 = vsub.s32 0, %v906
        %v908 = vrot.slane %v903, %v907
        %v910 = vadd.f32 %v901, %v908
        %v911 = vadd.f32 %v902, %v908
        %v912 = vmax.f32 %v910, 0.0
        %v913 = vmax.f32 %v911, 0.0
        %v914 = vpack.c.bf16 %v913, %v912
        %v916 = vunpack.c.l.b16 %v914
        %v917 = vunpack.c.h.b16 %v914
        %v918 = vpack.c.b16 %v916, %v916
        %v919 = vpack.c.b16 %v917, %v917
        %922 = vst [vmem:[%s328] sm:$0xf] %v918
        %923 = vst [vmem:[%s328 + $0x4] sm:$0xf] %v919
        %s924 = sand.u32 %s193, 1
        %s925 = scalar_lea.sflag [#allocation3], %s924
        %s926 = sand.u32 %s193, 1
        %s927 = smul.addr %s926, 8
        %s928 = scalar_lea.vmem [#allocation2], %s927
        // Predicated region
        $region45: #{tpu_custom_call.1} parent=43 // pred_check
          %p929 = pneg %p203
        $region46: #{tpu_custom_call.1} parent=43 // pred_check_branch
          %931 = sbr.rel (%p929) target = $region48
        $region47: #{tpu_custom_call.1} parent=43 // pred_region
          %s933 = ssub.s32 128, 128
          %934 = vsyncadd %s925, %s933
          %s935 = smul.addr %s25, 2
          %s936 = smul.addr %s24, 32
          %s937 = sadd.s32 %s935, %s936
          %s938 = smul.addr %s937, 64
          %s939 = scalar_lea.hbm %s6, %s938
          %s940 = sshll.u32 %s928, 4
          %s941 = int_to_ptr.vmem [resolvable:$true] %s940
          %946 = dma.vmem_to_hbm [thread:$0]  %s941, 128, %s939, %s925, 64, 64, 4
        $region48: #{tpu_custom_call.1} parent=43 // pred_fallthru
          _
      $region44: #{tpu_custom_call.1} parent=5 // pred_fallthru
        _
      %p947 = scmp.le.s32.totalorder 2, %s15
      // Predicated region
      $region49: #{tpu_custom_call.1} parent=5 // pred_check
        %p948 = pneg %p947
      $region50: #{tpu_custom_call.1} parent=5 // pred_check_branch
        %950 = sbr.rel (%p948) target = $region52
      $region51: #{tpu_custom_call.1} parent=5 // pred_region
        %s951 = ssub.s32 %s15, 2
        // Predicated region
        $region53: #{tpu_custom_call.1} parent=51 // pred_check
          %p952 = pneg %p209
        $region54: #{tpu_custom_call.1} parent=51 // pred_check_branch
          %954 = sbr.rel (%p952) target = $region56
        $region55: #{tpu_custom_call.1} parent=51 // pred_region
          %s955 = sand.u32 %s194, 1
          %s956 = scalar_lea.sflag [#allocation3], %s955
          %s957 = sand.u32 %s194, 1
          %s958 = smul.addr %s957, 8
          %s959 = scalar_lea.vmem [#allocation2], %s958
          %960 = dma.done %s956, 128
        $region56: #{tpu_custom_call.1} parent=51 // pred_fallthru
          _
      $region52: #{tpu_custom_call.1} parent=5 // pred_fallthru
        _
    $region6: #{tpu_custom_call.1} parent=1 // loop_footer
      %s19 = sadd.s32 1, %s15
    $region7: #{tpu_custom_call.1} parent=1 // loop_footer_branch
      %14 = sbr.rel target = $region3
    $region8: #{tpu_custom_call.1} parent=1 // loop_exit
      _
    %961 = vsyncpa [#allocation3], 1
    %s962 = scalar_lea.sflag [#allocation3], 1
    %963 = vsyncpa %s962, 1

</llo_original>
